<compile_context>
chip_gen: v6e
topology: v6e:2x2x1
jax: 0.10.0
libtpu: 0.0.40
codegen_flags: <defaults>
</compile_context>

<pallas_src>
import functools

import jax
import jax.numpy as jnp
from jax.experimental import pallas as pl
from jax.experimental.pallas import tpu as pltpu


def _se_kernel(x_ref, w1_ref, b1_ref, w2_ref, b2_ref, o_ref, *, inv_hw):
    # ---- Squeeze: global average pool over the (lane) spatial axis. --------
    # Read the tile here only for the reduction; the scale below re-reads the
    # ref instead of reusing this traced value, so the full tile never has a
    # live range spanning the matmuls/transcendentals (keeps vreg pressure at
    # the streaming pattern; VMEM re-reads are far above the HBM roofline).
    pooled = jnp.sum(x_ref[...].astype(jnp.float32), axis=-1) * inv_hw  # (Bn, C)

    # ---- Excite: Linear -> Mish -> Linear -> Sigmoid (tiny, all f32). ------
    h = jnp.dot(pooled, w1_ref[...],
                preferred_element_type=jnp.float32,
                precision=jax.lax.Precision.HIGHEST) + b1_ref[...]       # (Bn, S)
    # Mish(x) = x * tanh(softplus(x)); softplus with torch's threshold=20 branch.
    sp = jnp.where(h > 20.0, h, jnp.log1p(jnp.exp(jnp.minimum(h, 20.0))))
    h = h * jnp.tanh(sp)
    cal = jnp.dot(h, w2_ref[...],
                  preferred_element_type=jnp.float32,
                  precision=jax.lax.Precision.HIGHEST) + b2_ref[...]     # (Bn, C)
    cal = jax.nn.sigmoid(cal)

    # ---- Scale: channel-wise recalibration broadcast over spatial. ---------
    o_ref[...] = (x_ref[...].astype(jnp.float32) * cal[:, :, None]).astype(o_ref.dtype)


def _tpu_vmem_and_cores():
    """(physical VMEM bytes per TensorCore, TensorCores per chip), with fallbacks."""
    vmem = None
    try:
        vmem = int(pltpu.get_tpu_info().vmem_capacity_bytes)
    except Exception:
        vmem = None
    if not vmem or vmem <= 0:
        vmem = 64 << 20  # conservative default valid on every generation
    # v7x: 64 MiB/TC and 2 TCs per chip; v5e/v6e: 128 MiB and 1 TC.
    num_cores = 2 if vmem <= (64 << 20) else 1
    return vmem, num_cores


def squeeze_excitation(x_nchw, w1, b1, w2, b2):
    """x_nchw: (N, C, H, W).  w1: (C, S), b1: (1, S), w2: (S, C), b2: (1, C)."""
    N, C, H, W = x_nchw.shape
    HW = H * W
    S = w1.shape[1]
    itemsize = x_nchw.dtype.itemsize

    # NCHW viewed as (N, C, HW) — free reshape, no padding, no trailing slice.
    x = x_nchw.reshape(N, C, HW)

    vmem_physical, num_cores = _tpu_vmem_and_cores()
    # Generation-aware tile target: v7x (3.2 TB/s per TC) needs bigger steps to
    # amortize the ~0.35us fixed per-grid-step overhead.
    target_block_bytes = (5 << 20) if num_cores > 1 else (4 << 20)
    # Scoped-VMEM cap with headroom below physical for Mosaic scratch/semaphores;
    # on v5e/v6e (128 MiB physical) the cap is allowed well above 64 MiB.
    if vmem_physical <= (64 << 20):                 # v7x-like
        vmem_cap = vmem_physical - (8 << 20)
    else:                                           # v5e / v6e
        vmem_cap = min(vmem_physical - (24 << 20), 100 << 20)
    vmem_cap = max(vmem_cap, 32 << 20)

    per_batch_bytes = C * HW * itemsize
    weight_bytes = (C * S + S + S * C + C) * 4

    # --- Block sizing --------------------------------------------------------
    Bn = int(max(1, min(N, target_block_bytes // max(per_batch_bytes, 1))))
    # At least 2 grid steps per TensorCore whenever N permits, so i+1 prefetch /
    # i-1 writeback overlap compute and both TCs stay busy on megacore parts.
    min_steps = 2 * num_cores
    if N >= min_steps:
        Bn = min(Bn, pl.cdiv(N, min_steps))

    def _vmem_needed(bn, n_buffers):
        # x in + out, n_buffers deep each, plus resident weights and headroom.
        return 2 * n_buffers * bn * per_batch_bytes + 4 * weight_bytes + (2 << 20)

    # Guard: shrink the block (never below 1 batch) if double-buffering would
    # blow the capped VMEM; if even Bn=1 doesn't fit, drop to single buffering.
    while Bn > 1 and _vmem_needed(Bn, 2) > vmem_cap:
        Bn = max(1, Bn // 2)
    single_buffer = _vmem_needed(Bn, 2) > vmem_cap   # only possible at Bn == 1

    grid_n = pl.cdiv(N, Bn)
    # Keep grid_n a multiple of the core count where possible (megacore balance).
    if num_cores > 1 and grid_n > 1 and grid_n % num_cores != 0:
        rounded = pl.cdiv(grid_n, num_cores) * num_cores
        Bn = max(1, pl.cdiv(N, rounded))
        grid_n = pl.cdiv(N, Bn)

    n_buffers = 1 if single_buffer else 2
    vmem_limit = int(min(vmem_cap,
                         max(32 << 20, _vmem_needed(Bn, n_buffers) + (2 << 20))))

    # Advisory cost hint: this custom call is memory bound.
    cost = pl.CostEstimate(
        flops=int(2 * N * C * HW + 4 * N * C * S),
        transcendentals=int(N * (2 * S + C)),
        bytes_accessed=int(2 * N * C * HW * itemsize + weight_bytes),
    )

    # x in/out specs; only the rare "doesn't even fit single-batch" fallback
    # touches pipeline_mode.
    pipe_kwargs = {"pipeline_mode": pl.Buffered(1)} if single_buffer else {}
    x_in_spec = pl.BlockSpec((Bn, C, HW), lambda n: (n, 0, 0), **pipe_kwargs)
    x_out_spec = pl.BlockSpec((Bn, C, HW), lambda n: (n, 0, 0), **pipe_kwargs)

    out = pl.pallas_call(
        functools.partial(_se_kernel, inv_hw=1.0 / float(HW)),
        out_shape=jax.ShapeDtypeStruct((N, C, HW), x.dtype),
        grid_spec=pltpu.PrefetchScalarGridSpec(
            num_scalar_prefetch=0,
            grid=(grid_n,),
            in_specs=[
                x_in_spec,                                   # x block
                pl.BlockSpec((C, S), lambda n: (0, 0)),      # W1 (resident)
                pl.BlockSpec((1, S), lambda n: (0, 0)),      # b1
                pl.BlockSpec((S, C), lambda n: (0, 0)),      # W2 (resident)
                pl.BlockSpec((1, C), lambda n: (0, 0)),      # b2
            ],
            out_specs=x_out_spec,
        ),
        compiler_params=pltpu.CompilerParams(
            dimension_semantics=("parallel",),
            vmem_limit_bytes=vmem_limit,
        ),
        cost_estimate=cost,
    )(x, w1, b1, w2, b2)

    return out.reshape(N, C, H, W)


def _init_params(key, in_channels, squeeze_factor=8):
    """PyTorch-style Linear init U(-1/sqrt(fan_in), 1/sqrt(fan_in)).

    Weights are stored already transposed: y = x @ W + b.
    """
    s = in_channels // squeeze_factor
    k1, k2, k3, k4 = jax.random.split(key, 4)
    bound1 = 1.0 / jnp.sqrt(in_channels)
    bound2 = 1.0 / jnp.sqrt(s)
    w1 = jax.random.uniform(k1, (in_channels, s), jnp.float32, -bound1, bound1)
    b1 = jax.random.uniform(k2, (1, s), jnp.float32, -bound1, bound1)
    w2 = jax.random.uniform(k3, (s, in_channels), jnp.float32, -bound2, bound2)
    b2 = jax.random.uniform(k4, (1, in_channels), jnp.float32, -bound2, bound2)
    return w1, b1, w2, b2


def _reference(x, w1, b1, w2, b2):
    """Pure-JAX reference of the PyTorch forward."""
    pooled = jnp.mean(x, axis=(2, 3))                                    # (N, C)
    h = jnp.dot(pooled, w1, precision=jax.lax.Precision.HIGHEST) + b1
    sp = jnp.where(h > 20.0, h, jnp.log1p(jnp.exp(jnp.minimum(h, 20.0))))
    h = h * jnp.tanh(sp)
    cal = jax.nn.sigmoid(jnp.dot(h, w2, precision=jax.lax.Precision.HIGHEST) + b2)
    return x * cal[:, :, None, None]


if __name__ == "__main__":
    key = jax.random.PRNGKey(0)
    kx1, kx2, kp = jax.random.split(key, 3)

    C = 32                      # in_channels=32, squeeze_factor=8 -> S=4
    w1, b1, w2, b2 = _init_params(kp, C, squeeze_factor=8)

    # Case 1: spatial size a multiple of 128 lanes (16*16 = 256), dense stores.
    x1 = jax.random.normal(kx1, (2, C, 16, 16), jnp.float32)
    out1 = jax.block_until_ready(squeeze_excitation(x1, w1, b1, w2, b2))
    ref1 = _reference(x1, w1, b1, w2, b2)
    assert out1.shape == x1.shape
    assert jnp.allclose(out1, ref1, atol=1e-5, rtol=1e-5), "mismatch (dense HW)"

    # Case 2: ragged spatial size (14*14 = 196) and a boundary batch block.
    x2 = jax.random.normal(kx2, (3, C, 14, 14), jnp.float32)
    out2 = jax.block_until_ready(squeeze_excitation(x2, w1, b1, w2, b2))
    ref2 = _reference(x2, w1, b1, w2, b2)
    assert out2.shape == x2.shape
    assert jnp.allclose(out2, ref2, atol=1e-5, rtol=1e-5), "mismatch (ragged HW)"

    print("KERNEL_OK")
</pallas_src>

<mosaic_0001>
module attributes {stable_mosaic.version = 11 : i64} {
  func.func @_se_kernel(%arg0: i32, %arg1: memref<2x32x256xf32, #tpu.memory_space<vmem>>, %arg2: memref<32x4xf32, #tpu.memory_space<vmem>>, %arg3: memref<1x4xf32, #tpu.memory_space<vmem>>, %arg4: memref<4x32xf32, #tpu.memory_space<vmem>>, %arg5: memref<1x32xf32, #tpu.memory_space<vmem>>, %arg6: memref<2x32x256xf32, #tpu.memory_space<vmem>>) attributes {dimension_semantics = [#tpu.dimension_semantics<parallel>], iteration_bounds = array<i64: 1>, scalar_prefetch = 0 : i64, scratch_operands = 0 : i64, tpu.core_type = #tpu.core_type<tc>, window_params = [{transform_indices = @transform_0, window_bounds = array<i64: 2, 32, 256>}, {pipeline_mode = #tpu.pipeline_mode<synchronous>, transform_indices = @transform_1, window_bounds = array<i64: 32, 4>}, {pipeline_mode = #tpu.pipeline_mode<synchronous>, transform_indices = @transform_2, window_bounds = array<i64: 1, 4>}, {pipeline_mode = #tpu.pipeline_mode<synchronous>, transform_indices = @transform_3, window_bounds = array<i64: 4, 32>}, {pipeline_mode = #tpu.pipeline_mode<synchronous>, transform_indices = @transform_4, window_bounds = array<i64: 1, 32>}, {transform_indices = @transform_5, window_bounds = array<i64: 2, 32, 256>}]} {
    %c0 = arith.constant 0 : index
    %c0_0 = arith.constant 0 : index
    %c0_1 = arith.constant 0 : index
    %0 = vector.load %arg1[%c0, %c0_0, %c0_1] : memref<2x32x256xf32, #tpu.memory_space<vmem>>, vector<2x32x256xf32>
    %cst = arith.constant dense<0.000000e+00> : vector<2x32xf32>
    %1 = vector.multi_reduction <add>, %0, %cst [2] : vector<2x32x256xf32> to vector<2x32xf32>
    %cst_2 = arith.constant 3.906250e-03 : f32
    %2 = vector.broadcast %cst_2 : f32 to vector<2x32xf32>
    %3 = arith.mulf %1, %2 : vector<2x32xf32>
    %c0_3 = arith.constant 0 : index
    %c0_4 = arith.constant 0 : index
    %4 = vector.load %arg2[%c0_3, %c0_4] : memref<32x4xf32, #tpu.memory_space<vmem>>, vector<32x4xf32>
    %cst_5 = arith.constant dense<0.000000e+00> : vector<2x4xf32>
    %5 = tpu.matmul %3, %4, %cst_5 {dimension_numbers = #tpu.dot_dimension_numbers<[1], [0], [0], [1], [0, 0, 1, 1], [], []>, precision = #tpu.contract_precision<fp32>} : vector<2x32xf32>, vector<32x4xf32>, vector<2x4xf32> -> vector<2x4xf32>
    %c0_6 = arith.constant 0 : index
    %c0_7 = arith.constant 0 : index
    %6 = vector.load %arg3[%c0_6, %c0_7] : memref<1x4xf32, #tpu.memory_space<vmem>>, vector<1x4xf32>
    %7 = vector.broadcast %6 : vector<1x4xf32> to vector<2x4xf32>
    %8 = arith.addf %5, %7 : vector<2x4xf32>
    %cst_8 = arith.constant 2.000000e+01 : f32
    %9 = vector.broadcast %cst_8 : f32 to vector<2x4xf32>
    %10 = arith.cmpf ogt, %8, %9 : vector<2x4xf32>
    %cst_9 = arith.constant 2.000000e+01 : f32
    %11 = vector.broadcast %cst_9 : f32 to vector<2x4xf32>
    %12 = arith.minimumf %8, %11 : vector<2x4xf32>
    %13 = math.exp %12 : vector<2x4xf32>
    %14 = math.log1p %13 : vector<2x4xf32>
    %15 = arith.select %10, %8, %14 : vector<2x4xi1>, vector<2x4xf32>
    %16 = math.tanh %15 : vector<2x4xf32>
    %17 = arith.mulf %8, %16 : vector<2x4xf32>
    %c0_10 = arith.constant 0 : index
    %c0_11 = arith.constant 0 : index
    %18 = vector.load %arg4[%c0_10, %c0_11] : memref<4x32xf32, #tpu.memory_space<vmem>>, vector<4x32xf32>
    %cst_12 = arith.constant dense<0.000000e+00> : vector<2x32xf32>
    %19 = tpu.matmul %17, %18, %cst_12 {dimension_numbers = #tpu.dot_dimension_numbers<[1], [0], [0], [1], [0, 0, 1, 1], [], []>, precision = #tpu.contract_precision<fp32>} : vector<2x4xf32>, vector<4x32xf32>, vector<2x32xf32> -> vector<2x32xf32>
    %c0_13 = arith.constant 0 : index
    %c0_14 = arith.constant 0 : index
    %20 = vector.load %arg5[%c0_13, %c0_14] : memref<1x32xf32, #tpu.memory_space<vmem>>, vector<1x32xf32>
    %21 = vector.broadcast %20 : vector<1x32xf32> to vector<2x32xf32>
    %22 = arith.addf %19, %21 : vector<2x32xf32>
    %23 = arith.negf %22 : vector<2x32xf32>
    %24 = math.exp %23 : vector<2x32xf32>
    %cst_15 = arith.constant 1.000000e+00 : f32
    %25 = vector.broadcast %cst_15 : f32 to vector<2x32xf32>
    %26 = arith.addf %25, %24 : vector<2x32xf32>
    %27 = arith.divf %25, %26 : vector<2x32xf32>
    %c0_16 = arith.constant 0 : index
    %c0_17 = arith.constant 0 : index
    %c0_18 = arith.constant 0 : index
    %28 = vector.load %arg1[%c0_16, %c0_17, %c0_18] : memref<2x32x256xf32, #tpu.memory_space<vmem>>, vector<2x32x256xf32>
    %29 = vector.shape_cast %27 : vector<2x32xf32> to vector<2x32x1xf32>
    %30 = vector.broadcast %29 : vector<2x32x1xf32> to vector<2x32x256xf32>
    %31 = arith.mulf %28, %30 : vector<2x32x256xf32>
    %c0_19 = arith.constant 0 : index
    %c0_20 = arith.constant 0 : index
    %c0_21 = arith.constant 0 : index
    %32 = vector.load %arg6[%c0_19, %c0_20, %c0_21] : memref<2x32x256xf32, #tpu.memory_space<vmem>>, vector<2x32x256xf32>
    tpu.vector_store %arg6[%c0_19, %c0_20, %c0_21], %31 {strides = array<i32>} : memref<2x32x256xf32, #tpu.memory_space<vmem>>, vector<2x32x256xf32>,
    return
  }
  func.func @transform_0(%arg0: i32) -> (i32, i32, i32) {
    %c0_i32 = arith.constant 0 : i32
    %c0_i32_0 = arith.constant 0 : i32
    %c0_i32_1 = arith.constant 0 : i32
    return %arg0, %c0_i32, %c0_i32_0 : i32, i32, i32
  }
  func.func @transform_1(%arg0: i32) -> (i32, i32) {
    %c0_i32 = arith.constant 0 : i32
    %c0_i32_0 = arith.constant 0 : i32
    %c0_i32_1 = arith.constant 0 : i32
    return %c0_i32, %c0_i32_0 : i32, i32
  }
  func.func @transform_2(%arg0: i32) -> (i32, i32) {
    %c0_i32 = arith.constant 0 : i32
    %c0_i32_0 = arith.constant 0 : i32
    %c0_i32_1 = arith.constant 0 : i32
    return %c0_i32, %c0_i32_0 : i32, i32
  }
  func.func @transform_3(%arg0: i32) -> (i32, i32) {
    %c0_i32 = arith.constant 0 : i32
    %c0_i32_0 = arith.constant 0 : i32
    %c0_i32_1 = arith.constant 0 : i32
    return %c0_i32, %c0_i32_0 : i32, i32
  }
  func.func @transform_4(%arg0: i32) -> (i32, i32) {
    %c0_i32 = arith.constant 0 : i32
    %c0_i32_0 = arith.constant 0 : i32
    %c0_i32_1 = arith.constant 0 : i32
    return %c0_i32, %c0_i32_0 : i32, i32
  }
  func.func @transform_5(%arg0: i32) -> (i32, i32, i32) {
    %c0_i32 = arith.constant 0 : i32
    %c0_i32_0 = arith.constant 0 : i32
    %c0_i32_1 = arith.constant 0 : i32
    return %arg0, %c0_i32, %c0_i32_0 : i32, i32, i32
  }
}

</mosaic_0001>

<llo_original>
// kernel: tpu_custom_call.1
$region0: #{tpu_custom_call.1}
  #allocation0 [shape = 'u32[]', space=smem, size = 0x4, offset = 0x4, fixed_abs, tag = 'smem constant byte address 0x4 - core index']
  #allocation1 [shape = 'u32[144,128]{1,0:T(1,128)}', space=vmem, size = 0x12000, scoped, tag = 'internal scratch']
  %s0 = inlined_call_operand.hbm [shape: f32[2,32,256], index: 0, kind: input, shape index: {}]
  %s1 = inlined_call_operand.vmem [shape: f32[32,4], index: 1, kind: input, shape index: {}]
  %s2 = inlined_call_operand.vmem [shape: f32[1,4], index: 2, kind: input, shape index: {}]
  %s3 = inlined_call_operand.vmem [shape: f32[4,32], index: 3, kind: input, shape index: {}]
  %s4 = inlined_call_operand.vmem [shape: f32[1,32], index: 4, kind: input, shape index: {}]
  %s5 = inlined_call_operand.hbm [shape: f32[2,32,256], index: 5, kind: output, shape index: {}]
  %s6 = sld [smem:[#allocation0]]
  $region34: #{tpu_custom_call.1} parent=0
    _
  %s8 = ssub.s32 1, %s6
  %s9 = scalar_select 0, %s8, %s6
  $region1: #{tpu_custom_call.1} parent=0
    #allocation2 [shape = 'u8[65536]{0}', space=vmem, size = 0x10000, scoped, tag = 'input window, operand 0, single buffered']
    #allocation3 [shape = 's32[1]{0}', space=sflag, size = 0x4, scoped, tag = 'scoped memory for tpu_custom_call.1']
    #allocation4 [shape = 's32[1]{0}', space=sflag, size = 0x4, scoped, tag = 'scoped memory for tpu_custom_call.1']
    #allocation5 [shape = 'u8[65536]{0}', space=vmem, size = 0x10000, scoped, tag = 'output window, operand 0, single buffered']
    %10 = vsyncpa [#allocation3], 0
    %11 = vsyncpa [#allocation4], 0
    // Predicated region
    $region2: #{tpu_custom_call.1} parent=1 // pred_check
      _
    $region3: #{tpu_custom_call.1} parent=1 // pred_check_branch
      %13 = sbr.rel (0) target = $region5
    $region4: #{tpu_custom_call.1} parent=1 // pred_region
      %s15 = ssub.s32 2048, 2048
      %16 = vsyncadd [#allocation3], %s15
      %s17 = sshll.u32 [#allocation2], 4
      %s18 = int_to_ptr.vmem [resolvable:$true] %s17
      %23 = dma.hbm_to_vmem [thread:$0]  %s0, 2048, %s18, [#allocation3], 256, 256, 16
    $region5: #{tpu_custom_call.1} parent=1 // pred_fallthru
      _
    // Predicated region
    $region6: #{tpu_custom_call.1} parent=1 // pred_check
      _
    $region7: #{tpu_custom_call.1} parent=1 // pred_check_branch
      %25 = sbr.rel (0) target = $region9
    $region8: #{tpu_custom_call.1} parent=1 // pred_region
      _
    $region9: #{tpu_custom_call.1} parent=1 // pred_fallthru
      _
    // Predicated region
    $region10: #{tpu_custom_call.1} parent=1 // pred_check
      _
    $region11: #{tpu_custom_call.1} parent=1 // pred_check_branch
      %27 = sbr.rel (0) target = $region13
    $region12: #{tpu_custom_call.1} parent=1 // pred_region
      _
    $region13: #{tpu_custom_call.1} parent=1 // pred_fallthru
      _
    // Predicated region
    $region14: #{tpu_custom_call.1} parent=1 // pred_check
      _
    $region15: #{tpu_custom_call.1} parent=1 // pred_check_branch
      %29 = sbr.rel (0) target = $region17
    $region16: #{tpu_custom_call.1} parent=1 // pred_region
      _
    $region17: #{tpu_custom_call.1} parent=1 // pred_fallthru
      _
    // Predicated region
    $region18: #{tpu_custom_call.1} parent=1 // pred_check
      _
    $region19: #{tpu_custom_call.1} parent=1 // pred_check_branch
      %31 = sbr.rel (0) target = $region21
    $region20: #{tpu_custom_call.1} parent=1 // pred_region
      _
    $region21: #{tpu_custom_call.1} parent=1 // pred_fallthru
      _
    // Predicated region
    $region22: #{tpu_custom_call.1} parent=1 // pred_check
      _
    $region23: #{tpu_custom_call.1} parent=1 // pred_check_branch
      %33 = sbr.rel (0) target = $region25
    $region24: #{tpu_custom_call.1} parent=1 // pred_region
      %34 = dma.done [#allocation3], 2048
    $region25: #{tpu_custom_call.1} parent=1 // pred_fallthru
      _
    %v35 = vld [vmem:[#allocation2] sm:$0xff]
    %v36 = vld [vmem:[#allocation2 + $0x8] sm:$0xff]
    %v37 = vld [vmem:[#allocation2 + $0x10] sm:$0xff]
    %v38 = vld [vmem:[#allocation2 + $0x18] sm:$0xff]
    %v39 = vld [vmem:[#allocation2 + $0x20] sm:$0xff]
    %v40 = vld [vmem:[#allocation2 + $0x28] sm:$0xff]
    %v41 = vld [vmem:[#allocation2 + $0x30] sm:$0xff]
    %v42 = vld [vmem:[#allocation2 + $0x38] sm:$0xff]
    %v43 = vld [vmem:[#allocation2 + $0x40] sm:$0xff]
    %v44 = vld [vmem:[#allocation2 + $0x48] sm:$0xff]
    %v45 = vld [vmem:[#allocation2 + $0x50] sm:$0xff]
    %v46 = vld [vmem:[#allocation2 + $0x58] sm:$0xff]
    %v47 = vld [vmem:[#allocation2 + $0x60] sm:$0xff]
    %v48 = vld [vmem:[#allocation2 + $0x68] sm:$0xff]
    %v49 = vld [vmem:[#allocation2 + $0x70] sm:$0xff]
    %v50 = vld [vmem:[#allocation2 + $0x78] sm:$0xff]
    %v51 = vadd.f32 %v35, %v36
    %52 = vadd.xlane.f32.xlu0 %v51
    %v53 = vpop.xlane.xlu0 %52
    %v54 = vadd.f32 %v37, %v38
    %55 = vadd.xlane.f32.xlu0 %v54
    %v56 = vpop.xlane.xlu0 %55
    %v57 = vadd.f32 %v39, %v40
    %58 = vadd.xlane.f32.xlu0 %v57
    %v59 = vpop.xlane.xlu0 %58
    %v60 = vadd.f32 %v41, %v42
    %61 = vadd.xlane.f32.xlu0 %v60
    %v62 = vpop.xlane.xlu0 %61
    %v63 = vadd.f32 %v43, %v44
    %64 = vadd.xlane.f32.xlu0 %v63
    %v65 = vpop.xlane.xlu0 %64
    %v66 = vadd.f32 %v45, %v46
    %67 = vadd.xlane.f32.xlu0 %v66
    %v68 = vpop.xlane.xlu0 %67
    %v69 = vadd.f32 %v47, %v48
    %70 = vadd.xlane.f32.xlu0 %v69
    %v71 = vpop.xlane.xlu0 %70
    %v72 = vadd.f32 %v49, %v50
    %73 = vadd.xlane.f32.xlu0 %v72
    %v74 = vpop.xlane.xlu0 %73
    %v75 = vmul.f32 %v53, 0.00390625
    %v76 = vmul.f32 %v56, 0.00390625
    %v77 = vmul.f32 %v59, 0.00390625
    %v78 = vmul.f32 %v62, 0.00390625
    %v79 = vmul.f32 %v65, 0.00390625
    %v80 = vmul.f32 %v68, 0.00390625
    %v81 = vmul.f32 %v71, 0.00390625
    %v82 = vmul.f32 %v74, 0.00390625
    %v83 = vld [vmem:[%s1] sm:$0xff]
    %v84 = vld [vmem:[%s1 + $0x8] sm:$0xff]
    %v85 = vld [vmem:[%s1 + $0x10] sm:$0xff]
    %v86 = vld [vmem:[%s1 + $0x18] sm:$0xff]
    %v87 = vld [vmem:[%s2] sm:$0x1]
    %v89 = vlaneseq
    %v90 = vshrl.u32 %v89, 7
    %v91 = vsub.s32 0, %v90
    %v92 = vrot.slane %v87, %v91
    %v102 = vlaneseq
    %v103 = vand.u32 %v102, 127
    %v104 = vlaneseq
    %v105 = vshrl.u32 %v104, 7
    %v106 = vsub.s32 %v103, %v105
    %v107 = vrot.slane %v75, %v106
    %v108 = vadd.s32 %v103, 4294967288
    %v109 = vlaneseq
    %v110 = vshrl.u32 %v109, 7
    %v111 = vsub.s32 %v108, %v110
    %v112 = vrot.slane %v76, %v111
    %vm113 = vcmask 130112
    %v114 = vsel %vm113, %v112, %v107
    %v115 = vadd.s32 %v103, 4294967280
    %v116 = vlaneseq
    %v117 = vshrl.u32 %v116, 7
    %v118 = vsub.s32 %v115, %v117
    %v119 = vrot.slane %v77, %v118
    %vm120 = vcmask 195712
    %v121 = vsel %vm120, %v119, %v114
    %v122 = vadd.s32 %v103, 4294967272
    %v123 = vlaneseq
    %v124 = vshrl.u32 %v123, 7
    %v125 = vsub.s32 %v122, %v124
    %v126 = vrot.slane %v78, %v125
    %vm127 = vcmask 261312
    %v128 = vsel %vm127, %v126, %v121
    %v129 = vlaneseq
    %v130 = vshrl.u32 %v129, 7
    %v131 = vsub.s32 %v103, %v130
    %v132 = vrot.slane %v79, %v131
    %v133 = vlaneseq
    %v134 = vshrl.u32 %v133, 7
    %v135 = vsub.s32 %v108, %v134
    %v136 = vrot.slane %v80, %v135
    %v137 = vsel %vm113, %v136, %v132
    %v138 = vlaneseq
    %v139 = vshrl.u32 %v138, 7
    %v140 = vsub.s32 %v115, %v139
    %v141 = vrot.slane %v81, %v140
    %v142 = vsel %vm120, %v141, %v137
    %v143 = vlaneseq
    %v144 = vshrl.u32 %v143, 7
    %v145 = vsub.s32 %v122, %v144
    %v146 = vrot.slane %v82, %v145
    %v147 = vsel %vm127, %v146, %v142
    %vm148 = vcmask 1041409
    %v149 = vsel %vm148, %v147, %v128
    %vm150 = vcmask 261120
    %v151 = vsel %vm150, %v149, 0
    %153 = vmatprep.subr.mxu0 0.0
    %154 = vmatpush1.msra.mxu0 0.0
    %155 = vmatprep.subr.mxu0 0.0
    %156 = vmatpush1.msra.mxu0 0.0
    %157 = vmatprep.subr.mxu0 0.0
    %158 = vmatpush1.msra.mxu0 0.0
    %159 = vmatprep.subr.mxu0 0.0
    %160 = vmatpush1.msra.mxu0 0.0
    %161 = vmatprep.subr.mxu0 0.0
    %162 = vmatpush1.msra.mxu0 0.0
    %163 = vmatprep.subr.mxu0 0.0
    %164 = vmatpush1.msra.mxu0 0.0
    %165 = vmatprep.subr.mxu0 0.0
    %166 = vmatpush1.msra.mxu0 0.0
    %167 = vmatprep.subr.mxu0 0.0
    %168 = vmatpush1.msra.mxu0 0.0
    %169 = vmatprep.subr.mxu0 0.0
    %170 = vmatpush1.msra.mxu0 0.0
    %171 = vmatprep.subr.mxu0 0.0
    %172 = vmatpush1.msra.mxu0 0.0
    %173 = vmatprep.subr.mxu0 0.0
    %174 = vmatpush1.msra.mxu0 0.0
    %175 = vmatprep.subr.mxu0 0.0
    %176 = vmatpush1.msra.mxu0 0.0
    %177 = vmatprep.subr.mxu0 0.0
    %v178 = vand.u32 %v86, 4294901760
    %179 = vmatpush1.msra.mxu0 %v178
    %180 = vmatprep.subr.mxu0 0.0
    %v181 = vand.u32 %v85, 4294901760
    %182 = vmatpush1.msra.mxu0 %v181
    %183 = vmatprep.subr.mxu0 0.0
    %v184 = vand.u32 %v84, 4294901760
    %185 = vmatpush1.msra.mxu0 %v184
    %186 = vmatprep.subr.mxu0 0.0
    %v187 = vand.u32 %v83, 4294901760
    %188 = vmatpush1.msra.mxu0 %v187
    %189 = vmatprep.subr.mxu0 0.0
    %190 = vmatpush2.msra.mxu0 0.0
    %191 = vmatprep.subr.mxu0 0.0
    %192 = vmatpush2.msra.mxu0 0.0
    %193 = vmatprep.subr.mxu0 0.0
    %194 = vmatpush2.msra.mxu0 0.0
    %195 = vmatprep.subr.mxu0 0.0
    %196 = vmatpush2.msra.mxu0 0.0
    %197 = vmatprep.subr.mxu0 0.0
    %198 = vmatpush2.msra.mxu0 0.0
    %199 = vmatprep.subr.mxu0 0.0
    %200 = vmatpush2.msra.mxu0 0.0
    %201 = vmatprep.subr.mxu0 0.0
    %202 = vmatpush2.msra.mxu0 0.0
    %203 = vmatprep.subr.mxu0 0.0
    %204 = vmatpush2.msra.mxu0 0.0
    %205 = vmatprep.subr.mxu0 0.0
    %206 = vmatpush2.msra.mxu0 0.0
    %207 = vmatprep.subr.mxu0 0.0
    %208 = vmatpush2.msra.mxu0 0.0
    %209 = vmatprep.subr.mxu0 0.0
    %210 = vmatpush2.msra.mxu0 0.0
    %211 = vmatprep.subr.mxu0 0.0
    %212 = vmatpush2.msra.mxu0 0.0
    %213 = vmatprep.subr.mxu0 0.0
    %214 = vmatpush2.msra.mxu0 0.0
    %215 = vmatprep.subr.mxu0 0.0
    %216 = vmatpush2.msra.mxu0 0.0
    %217 = vmatprep.subr.mxu0 0.0
    %218 = vmatpush2.msra.mxu0 0.0
    %219 = vmatprep.subr.mxu0 0.0
    %220 = vmatpush2.msra.mxu0 0.0
    %221 = vmatprep.mubr.f32.mxu0 0.0
    %v222 = vand.u32 %v151, 4294901760
    %v223 = vsub.f32 %v151, %v222
    %v224 = vand.u32 %v223, 4294901760
    %v225 = vsub.f32 %v223, %v224
    %v226 = vand.u32 %v225, 4294901760
    %227 = vmatmul.mubr.f32.gmra.mxu0 %v226
    %v228 = vpop.f32.mrf.mxu0
    %v229 = vadd.f32 %v92, %v228
    %v230 = vpop.f32.mrf.mxu0
    %231 = vdwg.mxu0
    %232 = vmatprep.subr.mxu0 0.0
    %233 = vmatpush1.msra.mxu0 0.0
    %234 = vmatprep.subr.mxu0 0.0
    %235 = vmatpush1.msra.mxu0 0.0
    %236 = vmatprep.subr.mxu0 0.0
    %237 = vmatpush1.msra.mxu0 0.0
    %238 = vmatprep.subr.mxu0 0.0
    %239 = vmatpush1.msra.mxu0 0.0
    %240 = vmatprep.subr.mxu0 0.0
    %241 = vmatpush1.msra.mxu0 0.0
    %242 = vmatprep.subr.mxu0 0.0
    %243 = vmatpush1.msra.mxu0 0.0
    %244 = vmatprep.subr.mxu0 0.0
    %245 = vmatpush1.msra.mxu0 0.0
    %246 = vmatprep.subr.mxu0 0.0
    %247 = vmatpush1.msra.mxu0 0.0
    %248 = vmatprep.subr.mxu0 0.0
    %249 = vmatpush1.msra.mxu0 0.0
    %250 = vmatprep.subr.mxu0 0.0
    %251 = vmatpush1.msra.mxu0 0.0
    %252 = vmatprep.subr.mxu0 0.0
    %253 = vmatpush1.msra.mxu0 0.0
    %254 = vmatprep.subr.mxu0 0.0
    %255 = vmatpush1.msra.mxu0 0.0
    %256 = vmatprep.subr.mxu0 0.0
    %v257 = vand.u32 %v86, 4294901760
    %v258 = vsub.f32 %v86, %v257
    %v259 = vand.u32 %v258, 4294901760
    %v260 = vsub.f32 %v258, %v259
    %v261 = vand.u32 %v260, 4294901760
    %262 = vmatpush1.msra.mxu0 %v261
    %263 = vmatprep.subr.mxu0 0.0
    %v264 = vand.u32 %v85, 4294901760
    %v265 = vsub.f32 %v85, %v264
    %v266 = vand.u32 %v265, 4294901760
    %v267 = vsub.f32 %v265, %v266
    %v268 = vand.u32 %v267, 4294901760
    %269 = vmatpush1.msra.mxu0 %v268
    %270 = vmatprep.subr.mxu0 0.0
    %v271 = vand.u32 %v84, 4294901760
    %v272 = vsub.f32 %v84, %v271
    %v273 = vand.u32 %v272, 4294901760
    %v274 = vsub.f32 %v272, %v273
    %v275 = vand.u32 %v274, 4294901760
    %276 = vmatpush1.msra.mxu0 %v275
    %277 = vmatprep.subr.mxu0 0.0
    %v278 = vand.u32 %v83, 4294901760
    %v279 = vsub.f32 %v83, %v278
    %v280 = vand.u32 %v279, 4294901760
    %v281 = vsub.f32 %v279, %v280
    %v282 = vand.u32 %v281, 4294901760
    %283 = vmatpush1.msra.mxu0 %v282
    %284 = vmatprep.subr.mxu0 0.0
    %285 = vmatpush2.msra.mxu0 0.0
    %286 = vmatprep.subr.mxu0 0.0
    %287 = vmatpush2.msra.mxu0 0.0
    %288 = vmatprep.subr.mxu0 0.0
    %289 = vmatpush2.msra.mxu0 0.0
    %290 = vmatprep.subr.mxu0 0.0
    %291 = vmatpush2.msra.mxu0 0.0
    %292 = vmatprep.subr.mxu0 0.0
    %293 = vmatpush2.msra.mxu0 0.0
    %294 = vmatprep.subr.mxu0 0.0
    %295 = vmatpush2.msra.mxu0 0.0
    %296 = vmatprep.subr.mxu0 0.0
    %297 = vmatpush2.msra.mxu0 0.0
    %298 = vmatprep.subr.mxu0 0.0
    %299 = vmatpush2.msra.mxu0 0.0
    %300 = vmatprep.subr.mxu0 0.0
    %301 = vmatpush2.msra.mxu0 0.0
    %302 = vmatprep.subr.mxu0 0.0
    %303 = vmatpush2.msra.mxu0 0.0
    %304 = vmatprep.subr.mxu0 0.0
    %305 = vmatpush2.msra.mxu0 0.0
    %306 = vmatprep.subr.mxu0 0.0
    %307 = vmatpush2.msra.mxu0 0.0
    %308 = vmatprep.subr.mxu0 0.0
    %309 = vmatpush2.msra.mxu0 0.0
    %310 = vmatprep.subr.mxu0 0.0
    %311 = vmatpush2.msra.mxu0 0.0
    %312 = vmatprep.subr.mxu0 0.0
    %313 = vmatpush2.msra.mxu0 0.0
    %314 = vmatprep.subr.mxu0 0.0
    %315 = vmatpush2.msra.mxu0 0.0
    %316 = vmatprep.mubr.f32.mxu0 0.0
    %v317 = vand.u32 %v151, 4294901760
    %318 = vmatmul.mubr.f32.gmra.mxu0 %v317
    %v319 = vpop.f32.mrf.mxu0
    %v320 = vadd.f32 %v229, %v319
    %v321 = vpop.f32.mrf.mxu0
    %322 = vdwg.mxu0
    %323 = vmatprep.subr.mxu0 0.0
    %324 = vmatpush1.msra.mxu0 0.0
    %325 = vmatprep.subr.mxu0 0.0
    %326 = vmatpush1.msra.mxu0 0.0
    %327 = vmatprep.subr.mxu0 0.0
    %328 = vmatpush1.msra.mxu0 0.0
    %329 = vmatprep.subr.mxu0 0.0
    %330 = vmatpush1.msra.mxu0 0.0
    %331 = vmatprep.subr.mxu0 0.0
    %332 = vmatpush1.msra.mxu0 0.0
    %333 = vmatprep.subr.mxu0 0.0
    %334 = vmatpush1.msra.mxu0 0.0
    %335 = vmatprep.subr.mxu0 0.0
    %336 = vmatpush1.msra.mxu0 0.0
    %337 = vmatprep.subr.mxu0 0.0
    %338 = vmatpush1.msra.mxu0 0.0
    %339 = vmatprep.subr.mxu0 0.0
    %340 = vmatpush1.msra.mxu0 0.0
    %341 = vmatprep.subr.mxu0 0.0
    %342 = vmatpush1.msra.mxu0 0.0
    %343 = vmatprep.subr.mxu0 0.0
    %344 = vmatpush1.msra.mxu0 0.0
    %345 = vmatprep.subr.mxu0 0.0
    %346 = vmatpush1.msra.mxu0 0.0
    %347 = vmatprep.subr.mxu0 0.0
    %v348 = vand.u32 %v86, 4294901760
    %v349 = vsub.f32 %v86, %v348
    %350 = vmatpush1.msra.mxu0 %v349
    %351 = vmatprep.subr.mxu0 0.0
    %v352 = vand.u32 %v85, 4294901760
    %v353 = vsub.f32 %v85, %v352
    %354 = vmatpush1.msra.mxu0 %v353
    %355 = vmatprep.subr.mxu0 0.0
    %v356 = vand.u32 %v84, 4294901760
    %v357 = vsub.f32 %v84, %v356
    %358 = vmatpush1.msra.mxu0 %v357
    %359 = vmatprep.subr.mxu0 0.0
    %v360 = vand.u32 %v83, 4294901760
    %v361 = vsub.f32 %v83, %v360
    %362 = vmatpush1.msra.mxu0 %v361
    %363 = vmatprep.subr.mxu0 0.0
    %364 = vmatpush2.msra.mxu0 0.0
    %365 = vmatprep.subr.mxu0 0.0
    %366 = vmatpush2.msra.mxu0 0.0
    %367 = vmatprep.subr.mxu0 0.0
    %368 = vmatpush2.msra.mxu0 0.0
    %369 = vmatprep.subr.mxu0 0.0
    %370 = vmatpush2.msra.mxu0 0.0
    %371 = vmatprep.subr.mxu0 0.0
    %372 = vmatpush2.msra.mxu0 0.0
    %373 = vmatprep.subr.mxu0 0.0
    %374 = vmatpush2.msra.mxu0 0.0
    %375 = vmatprep.subr.mxu0 0.0
    %376 = vmatpush2.msra.mxu0 0.0
    %377 = vmatprep.subr.mxu0 0.0
    %378 = vmatpush2.msra.mxu0 0.0
    %379 = vmatprep.subr.mxu0 0.0
    %380 = vmatpush2.msra.mxu0 0.0
    %381 = vmatprep.subr.mxu0 0.0
    %382 = vmatpush2.msra.mxu0 0.0
    %383 = vmatprep.subr.mxu0 0.0
    %384 = vmatpush2.msra.mxu0 0.0
    %385 = vmatprep.subr.mxu0 0.0
    %386 = vmatpush2.msra.mxu0 0.0
    %387 = vmatprep.subr.mxu0 0.0
    %388 = vmatpush2.msra.mxu0 0.0
    %389 = vmatprep.subr.mxu0 0.0
    %390 = vmatpush2.msra.mxu0 0.0
    %391 = vmatprep.subr.mxu0 0.0
    %392 = vmatpush2.msra.mxu0 0.0
    %393 = vmatprep.subr.mxu0 0.0
    %394 = vmatpush2.msra.mxu0 0.0
    %395 = vmatprep.mubr.f32.mxu0 0.0
    %v396 = vand.u32 %v151, 4294901760
    %v397 = vsub.f32 %v151, %v396
    %398 = vmatmul.mubr.f32.gmra.mxu0 %v397
    %v399 = vpop.f32.mrf.mxu0
    %v400 = vadd.f32 %v320, %v399
    %v401 = vpop.f32.mrf.mxu0
    %402 = vdwg.mxu0
    %403 = vmatprep.subr.mxu0 0.0
    %404 = vmatpush1.msra.mxu0 0.0
    %405 = vmatprep.subr.mxu0 0.0
    %406 = vmatpush1.msra.mxu0 0.0
    %407 = vmatprep.subr.mxu0 0.0
    %408 = vmatpush1.msra.mxu0 0.0
    %409 = vmatprep.subr.mxu0 0.0
    %410 = vmatpush1.msra.mxu0 0.0
    %411 = vmatprep.subr.mxu0 0.0
    %412 = vmatpush1.msra.mxu0 0.0
    %413 = vmatprep.subr.mxu0 0.0
    %414 = vmatpush1.msra.mxu0 0.0
    %415 = vmatprep.subr.mxu0 0.0
    %416 = vmatpush1.msra.mxu0 0.0
    %417 = vmatprep.subr.mxu0 0.0
    %418 = vmatpush1.msra.mxu0 0.0
    %419 = vmatprep.subr.mxu0 0.0
    %420 = vmatpush1.msra.mxu0 0.0
    %421 = vmatprep.subr.mxu0 0.0
    %422 = vmatpush1.msra.mxu0 0.0
    %423 = vmatprep.subr.mxu0 0.0
    %424 = vmatpush1.msra.mxu0 0.0
    %425 = vmatprep.subr.mxu0 0.0
    %426 = vmatpush1.msra.mxu0 0.0
    %427 = vmatprep.subr.mxu0 0.0
    %v428 = vand.u32 %v86, 4294901760
    %429 = vmatpush1.msra.mxu0 %v428
    %430 = vmatprep.subr.mxu0 0.0
    %v431 = vand.u32 %v85, 4294901760
    %432 = vmatpush1.msra.mxu0 %v431
    %433 = vmatprep.subr.mxu0 0.0
    %v434 = vand.u32 %v84, 4294901760
    %435 = vmatpush1.msra.mxu0 %v434
    %436 = vmatprep.subr.mxu0 0.0
    %v437 = vand.u32 %v83, 4294901760
    %438 = vmatpush1.msra.mxu0 %v437
    %439 = vmatprep.subr.mxu0 0.0
    %440 = vmatpush2.msra.mxu0 0.0
    %441 = vmatprep.subr.mxu0 0.0
    %442 = vmatpush2.msra.mxu0 0.0
    %443 = vmatprep.subr.mxu0 0.0
    %444 = vmatpush2.msra.mxu0 0.0
    %445 = vmatprep.subr.mxu0 0.0
    %446 = vmatpush2.msra.mxu0 0.0
    %447 = vmatprep.subr.mxu0 0.0
    %448 = vmatpush2.msra.mxu0 0.0
    %449 = vmatprep.subr.mxu0 0.0
    %450 = vmatpush2.msra.mxu0 0.0
    %451 = vmatprep.subr.mxu0 0.0
    %452 = vmatpush2.msra.mxu0 0.0
    %453 = vmatprep.subr.mxu0 0.0
    %454 = vmatpush2.msra.mxu0 0.0
    %455 = vmatprep.subr.mxu0 0.0
    %456 = vmatpush2.msra.mxu0 0.0
    %457 = vmatprep.subr.mxu0 0.0
    %458 = vmatpush2.msra.mxu0 0.0
    %459 = vmatprep.subr.mxu0 0.0
    %460 = vmatpush2.msra.mxu0 0.0
    %461 = vmatprep.subr.mxu0 0.0
    %462 = vmatpush2.msra.mxu0 0.0
    %463 = vmatprep.subr.mxu0 0.0
    %464 = vmatpush2.msra.mxu0 0.0
    %465 = vmatprep.subr.mxu0 0.0
    %466 = vmatpush2.msra.mxu0 0.0
    %467 = vmatprep.subr.mxu0 0.0
    %468 = vmatpush2.msra.mxu0 0.0
    %469 = vmatprep.subr.mxu0 0.0
    %470 = vmatpush2.msra.mxu0 0.0
    %471 = vmatprep.mubr.f32.mxu0 0.0
    %v472 = vand.u32 %v151, 4294901760
    %v473 = vsub.f32 %v151, %v472
    %v474 = vand.u32 %v473, 4294901760
    %475 = vmatmul.mubr.f32.gmra.mxu0 %v474
    %v476 = vpop.f32.mrf.mxu0
    %v477 = vadd.f32 %v400, %v476
    %v478 = vpop.f32.mrf.mxu0
    %479 = vdwg.mxu0
    %480 = vmatprep.subr.mxu0 0.0
    %481 = vmatpush1.msra.mxu0 0.0
    %482 = vmatprep.subr.mxu0 0.0
    %483 = vmatpush1.msra.mxu0 0.0
    %484 = vmatprep.subr.mxu0 0.0
    %485 = vmatpush1.msra.mxu0 0.0
    %486 = vmatprep.subr.mxu0 0.0
    %487 = vmatpush1.msra.mxu0 0.0
    %488 = vmatprep.subr.mxu0 0.0
    %489 = vmatpush1.msra.mxu0 0.0
    %490 = vmatprep.subr.mxu0 0.0
    %491 = vmatpush1.msra.mxu0 0.0
    %492 = vmatprep.subr.mxu0 0.0
    %493 = vmatpush1.msra.mxu0 0.0
    %494 = vmatprep.subr.mxu0 0.0
    %495 = vmatpush1.msra.mxu0 0.0
    %496 = vmatprep.subr.mxu0 0.0
    %497 = vmatpush1.msra.mxu0 0.0
    %498 = vmatprep.subr.mxu0 0.0
    %499 = vmatpush1.msra.mxu0 0.0
    %500 = vmatprep.subr.mxu0 0.0
    %501 = vmatpush1.msra.mxu0 0.0
    %502 = vmatprep.subr.mxu0 0.0
    %503 = vmatpush1.msra.mxu0 0.0
    %504 = vmatprep.subr.mxu0 0.0
    %v505 = vand.u32 %v86, 4294901760
    %v506 = vsub.f32 %v86, %v505
    %v507 = vand.u32 %v506, 4294901760
    %508 = vmatpush1.msra.mxu0 %v507
    %509 = vmatprep.subr.mxu0 0.0
    %v510 = vand.u32 %v85, 4294901760
    %v511 = vsub.f32 %v85, %v510
    %v512 = vand.u32 %v511, 4294901760
    %513 = vmatpush1.msra.mxu0 %v512
    %514 = vmatprep.subr.mxu0 0.0
    %v515 = vand.u32 %v84, 4294901760
    %v516 = vsub.f32 %v84, %v515
    %v517 = vand.u32 %v516, 4294901760
    %518 = vmatpush1.msra.mxu0 %v517
    %519 = vmatprep.subr.mxu0 0.0
    %v520 = vand.u32 %v83, 4294901760
    %v521 = vsub.f32 %v83, %v520
    %v522 = vand.u32 %v521, 4294901760
    %523 = vmatpush1.msra.mxu0 %v522
    %524 = vmatprep.subr.mxu0 0.0
    %525 = vmatpush2.msra.mxu0 0.0
    %526 = vmatprep.subr.mxu0 0.0
    %527 = vmatpush2.msra.mxu0 0.0
    %528 = vmatprep.subr.mxu0 0.0
    %529 = vmatpush2.msra.mxu0 0.0
    %530 = vmatprep.subr.mxu0 0.0
    %531 = vmatpush2.msra.mxu0 0.0
    %532 = vmatprep.subr.mxu0 0.0
    %533 = vmatpush2.msra.mxu0 0.0
    %534 = vmatprep.subr.mxu0 0.0
    %535 = vmatpush2.msra.mxu0 0.0
    %536 = vmatprep.subr.mxu0 0.0
    %537 = vmatpush2.msra.mxu0 0.0
    %538 = vmatprep.subr.mxu0 0.0
    %539 = vmatpush2.msra.mxu0 0.0
    %540 = vmatprep.subr.mxu0 0.0
    %541 = vmatpush2.msra.mxu0 0.0
    %542 = vmatprep.subr.mxu0 0.0
    %543 = vmatpush2.msra.mxu0 0.0
    %544 = vmatprep.subr.mxu0 0.0
    %545 = vmatpush2.msra.mxu0 0.0
    %546 = vmatprep.subr.mxu0 0.0
    %547 = vmatpush2.msra.mxu0 0.0
    %548 = vmatprep.subr.mxu0 0.0
    %549 = vmatpush2.msra.mxu0 0.0
    %550 = vmatprep.subr.mxu0 0.0
    %551 = vmatpush2.msra.mxu0 0.0
    %552 = vmatprep.subr.mxu0 0.0
    %553 = vmatpush2.msra.mxu0 0.0
    %554 = vmatprep.subr.mxu0 0.0
    %555 = vmatpush2.msra.mxu0 0.0
    %556 = vmatprep.mubr.f32.mxu0 0.0
    %v557 = vand.u32 %v151, 4294901760
    %558 = vmatmul.mubr.f32.gmra.mxu0 %v557
    %v559 = vpop.f32.mrf.mxu0
    %v560 = vadd.f32 %v477, %v559
    %v561 = vpop.f32.mrf.mxu0
    %562 = vdwg.mxu0
    %563 = vmatprep.subr.mxu0 0.0
    %564 = vmatpush1.msra.mxu0 0.0
    %565 = vmatprep.subr.mxu0 0.0
    %566 = vmatpush1.msra.mxu0 0.0
    %567 = vmatprep.subr.mxu0 0.0
    %568 = vmatpush1.msra.mxu0 0.0
    %569 = vmatprep.subr.mxu0 0.0
    %570 = vmatpush1.msra.mxu0 0.0
    %571 = vmatprep.subr.mxu0 0.0
    %572 = vmatpush1.msra.mxu0 0.0
    %573 = vmatprep.subr.mxu0 0.0
    %574 = vmatpush1.msra.mxu0 0.0
    %575 = vmatprep.subr.mxu0 0.0
    %576 = vmatpush1.msra.mxu0 0.0
    %577 = vmatprep.subr.mxu0 0.0
    %578 = vmatpush1.msra.mxu0 0.0
    %579 = vmatprep.subr.mxu0 0.0
    %580 = vmatpush1.msra.mxu0 0.0
    %581 = vmatprep.subr.mxu0 0.0
    %582 = vmatpush1.msra.mxu0 0.0
    %583 = vmatprep.subr.mxu0 0.0
    %584 = vmatpush1.msra.mxu0 0.0
    %585 = vmatprep.subr.mxu0 0.0
    %586 = vmatpush1.msra.mxu0 0.0
    %587 = vmatprep.subr.mxu0 0.0
    %v588 = vand.u32 %v86, 4294901760
    %589 = vmatpush1.msra.mxu0 %v588
    %590 = vmatprep.subr.mxu0 0.0
    %v591 = vand.u32 %v85, 4294901760
    %592 = vmatpush1.msra.mxu0 %v591
    %593 = vmatprep.subr.mxu0 0.0
    %v594 = vand.u32 %v84, 4294901760
    %595 = vmatpush1.msra.mxu0 %v594
    %596 = vmatprep.subr.mxu0 0.0
    %v597 = vand.u32 %v83, 4294901760
    %598 = vmatpush1.msra.mxu0 %v597
    %599 = vmatprep.subr.mxu0 0.0
    %600 = vmatpush2.msra.mxu0 0.0
    %601 = vmatprep.subr.mxu0 0.0
    %602 = vmatpush2.msra.mxu0 0.0
    %603 = vmatprep.subr.mxu0 0.0
    %604 = vmatpush2.msra.mxu0 0.0
    %605 = vmatprep.subr.mxu0 0.0
    %606 = vmatpush2.msra.mxu0 0.0
    %607 = vmatprep.subr.mxu0 0.0
    %608 = vmatpush2.msra.mxu0 0.0
    %609 = vmatprep.subr.mxu0 0.0
    %610 = vmatpush2.msra.mxu0 0.0
    %611 = vmatprep.subr.mxu0 0.0
    %612 = vmatpush2.msra.mxu0 0.0
    %613 = vmatprep.subr.mxu0 0.0
    %614 = vmatpush2.msra.mxu0 0.0
    %615 = vmatprep.subr.mxu0 0.0
    %616 = vmatpush2.msra.mxu0 0.0
    %617 = vmatprep.subr.mxu0 0.0
    %618 = vmatpush2.msra.mxu0 0.0
    %619 = vmatprep.subr.mxu0 0.0
    %620 = vmatpush2.msra.mxu0 0.0
    %621 = vmatprep.subr.mxu0 0.0
    %622 = vmatpush2.msra.mxu0 0.0
    %623 = vmatprep.subr.mxu0 0.0
    %624 = vmatpush2.msra.mxu0 0.0
    %625 = vmatprep.subr.mxu0 0.0
    %626 = vmatpush2.msra.mxu0 0.0
    %627 = vmatprep.subr.mxu0 0.0
    %628 = vmatpush2.msra.mxu0 0.0
    %629 = vmatprep.subr.mxu0 0.0
    %630 = vmatpush2.msra.mxu0 0.0
    %631 = vmatprep.mubr.f32.mxu0 0.0
    %v632 = vand.u32 %v151, 4294901760
    %633 = vmatmul.mubr.f32.gmra.mxu0 %v632
    %v634 = vpop.f32.mrf.mxu0
    %v635 = vadd.f32 %v560, %v634
    %v636 = vpop.f32.mrf.mxu0
    %637 = vdwg.mxu0
    %vm638 = vcmp.gt.f32.partialorder %v635, 20.0
    %v639 = vmin.f32 %v635, 20.0
    %v640 = vmul.f32 %v639, 1.442695
    %v641 = vpow.pop %v640
    %v642 = vadd.f32 %v641, 1.0
    %v643 = vlog2.pop %v642
    %v644 = vmul.f32 %v643, 0.6931472
    %v645 = vmul.f32 -0.5, %v641
    %v646 = vadd.f32 %v645, 1.0
    %v647 = vmul.f32 %v646, %v641
    %v648 = vand.u32 2147483647, %v641
    %vm649 = vcmp.lt.f32.partialorder %v648, 0.0004427343
    %v650 = vsel %vm649, %v647, %v644
    %v651 = vsel %vm638, %v635, %v650
    %v652 = vtanh.pop %v651
    %v653 = vmul.f32 %v635, %v652
    %v654 = vld [vmem:[%s3] sm:$0xf]
    %v655 = vld [vmem:[%s4] sm:$0x1]
    %v657 = vlaneseq
    %v658 = vshrl.u32 %v657, 7
    %v659 = vsub.s32 0, %v658
    %v660 = vrot.slane %v655, %v659
    %vm662 = vcmask 31744
    %v664 = vsel %vm662, %v653, 0
    %vm666 = vcmask 1043456
    %v668 = vsel %vm666, %v654, 0
    %670 = vmatprep.subr.mxu0 0.0
    %671 = vmatpush1.msra.mxu0 0.0
    %672 = vmatprep.subr.mxu0 0.0
    %673 = vmatpush1.msra.mxu0 0.0
    %674 = vmatprep.subr.mxu0 0.0
    %675 = vmatpush1.msra.mxu0 0.0
    %676 = vmatprep.subr.mxu0 0.0
    %677 = vmatpush1.msra.mxu0 0.0
    %678 = vmatprep.subr.mxu0 0.0
    %679 = vmatpush1.msra.mxu0 0.0
    %680 = vmatprep.subr.mxu0 0.0
    %681 = vmatpush1.msra.mxu0 0.0
    %682 = vmatprep.subr.mxu0 0.0
    %683 = vmatpush1.msra.mxu0 0.0
    %684 = vmatprep.subr.mxu0 0.0
    %685 = vmatpush1.msra.mxu0 0.0
    %686 = vmatprep.subr.mxu0 0.0
    %687 = vmatpush1.msra.mxu0 0.0
    %688 = vmatprep.subr.mxu0 0.0
    %689 = vmatpush1.msra.mxu0 0.0
    %690 = vmatprep.subr.mxu0 0.0
    %691 = vmatpush1.msra.mxu0 0.0
    %692 = vmatprep.subr.mxu0 0.0
    %693 = vmatpush1.msra.mxu0 0.0
    %694 = vmatprep.subr.mxu0 0.0
    %695 = vmatpush1.msra.mxu0 0.0
    %696 = vmatprep.subr.mxu0 0.0
    %697 = vmatpush1.msra.mxu0 0.0
    %698 = vmatprep.subr.mxu0 0.0
    %699 = vmatpush1.msra.mxu0 0.0
    %700 = vmatprep.subr.mxu0 0.0
    %v701 = vand.u32 %v668, 4294901760
    %702 = vmatpush1.msra.mxu0 %v701
    %703 = vmatprep.subr.mxu0 0.0
    %704 = vmatpush2.msra.mxu0 0.0
    %705 = vmatprep.subr.mxu0 0.0
    %706 = vmatpush2.msra.mxu0 0.0
    %707 = vmatprep.subr.mxu0 0.0
    %708 = vmatpush2.msra.mxu0 0.0
    %709 = vmatprep.subr.mxu0 0.0
    %710 = vmatpush2.msra.mxu0 0.0
    %711 = vmatprep.subr.mxu0 0.0
    %712 = vmatpush2.msra.mxu0 0.0
    %713 = vmatprep.subr.mxu0 0.0
    %714 = vmatpush2.msra.mxu0 0.0
    %715 = vmatprep.subr.mxu0 0.0
    %716 = vmatpush2.msra.mxu0 0.0
    %717 = vmatprep.subr.mxu0 0.0
    %718 = vmatpush2.msra.mxu0 0.0
    %719 = vmatprep.subr.mxu0 0.0
    %720 = vmatpush2.msra.mxu0 0.0
    %721 = vmatprep.subr.mxu0 0.0
    %722 = vmatpush2.msra.mxu0 0.0
    %723 = vmatprep.subr.mxu0 0.0
    %724 = vmatpush2.msra.mxu0 0.0
    %725 = vmatprep.subr.mxu0 0.0
    %726 = vmatpush2.msra.mxu0 0.0
    %727 = vmatprep.subr.mxu0 0.0
    %728 = vmatpush2.msra.mxu0 0.0
    %729 = vmatprep.subr.mxu0 0.0
    %730 = vmatpush2.msra.mxu0 0.0
    %731 = vmatprep.subr.mxu0 0.0
    %732 = vmatpush2.msra.mxu0 0.0
    %733 = vmatprep.subr.mxu0 0.0
    %734 = vmatpush2.msra.mxu0 0.0
    %735 = vmatprep.mubr.f32.mxu0 0.0
    %v736 = vand.u32 %v664, 4294901760
    %v737 = vsub.f32 %v664, %v736
    %v738 = vand.u32 %v737, 4294901760
    %v739 = vsub.f32 %v737, %v738
    %v740 = vand.u32 %v739, 4294901760
    %741 = vmatmul.mubr.f32.gmra.mxu0 %v740
    %v742 = vpop.f32.mrf.mxu0
    %v743 = vadd.f32 %v660, %v742
    %v744 = vpop.f32.mrf.mxu0
    %745 = vdwg.mxu0
    %746 = vmatprep.subr.mxu0 0.0
    %747 = vmatpush1.msra.mxu0 0.0
    %748 = vmatprep.subr.mxu0 0.0
    %749 = vmatpush1.msra.mxu0 0.0
    %750 = vmatprep.subr.mxu0 0.0
    %751 = vmatpush1.msra.mxu0 0.0
    %752 = vmatprep.subr.mxu0 0.0
    %753 = vmatpush1.msra.mxu0 0.0
    %754 = vmatprep.subr.mxu0 0.0
    %755 = vmatpush1.msra.mxu0 0.0
    %756 = vmatprep.subr.mxu0 0.0
    %757 = vmatpush1.msra.mxu0 0.0
    %758 = vmatprep.subr.mxu0 0.0
    %759 = vmatpush1.msra.mxu0 0.0
    %760 = vmatprep.subr.mxu0 0.0
    %761 = vmatpush1.msra.mxu0 0.0
    %762 = vmatprep.subr.mxu0 0.0
    %763 = vmatpush1.msra.mxu0 0.0
    %764 = vmatprep.subr.mxu0 0.0
    %765 = vmatpush1.msra.mxu0 0.0
    %766 = vmatprep.subr.mxu0 0.0
    %767 = vmatpush1.msra.mxu0 0.0
    %768 = vmatprep.subr.mxu0 0.0
    %769 = vmatpush1.msra.mxu0 0.0
    %770 = vmatprep.subr.mxu0 0.0
    %771 = vmatpush1.msra.mxu0 0.0
    %772 = vmatprep.subr.mxu0 0.0
    %773 = vmatpush1.msra.mxu0 0.0
    %774 = vmatprep.subr.mxu0 0.0
    %775 = vmatpush1.msra.mxu0 0.0
    %776 = vmatprep.subr.mxu0 0.0
    %v777 = vand.u32 %v668, 4294901760
    %v778 = vsub.f32 %v668, %v777
    %v779 = vand.u32 %v778, 4294901760
    %v780 = vsub.f32 %v778, %v779
    %v781 = vand.u32 %v780, 4294901760
    %782 = vmatpush1.msra.mxu0 %v781
    %783 = vmatprep.subr.mxu0 0.0
    %784 = vmatpush2.msra.mxu0 0.0
    %785 = vmatprep.subr.mxu0 0.0
    %786 = vmatpush2.msra.mxu0 0.0
    %787 = vmatprep.subr.mxu0 0.0
    %788 = vmatpush2.msra.mxu0 0.0
    %789 = vmatprep.subr.mxu0 0.0
    %790 = vmatpush2.msra.mxu0 0.0
    %791 = vmatprep.subr.mxu0 0.0
    %792 = vmatpush2.msra.mxu0 0.0
    %793 = vmatprep.subr.mxu0 0.0
    %794 = vmatpush2.msra.mxu0 0.0
    %795 = vmatprep.subr.mxu0 0.0
    %796 = vmatpush2.msra.mxu0 0.0
    %797 = vmatprep.subr.mxu0 0.0
    %798 = vmatpush2.msra.mxu0 0.0
    %799 = vmatprep.subr.mxu0 0.0
    %800 = vmatpush2.msra.mxu0 0.0
    %801 = vmatprep.subr.mxu0 0.0
    %802 = vmatpush2.msra.mxu0 0.0
    %803 = vmatprep.subr.mxu0 0.0
    %804 = vmatpush2.msra.mxu0 0.0
    %805 = vmatprep.subr.mxu0 0.0
    %806 = vmatpush2.msra.mxu0 0.0
    %807 = vmatprep.subr.mxu0 0.0
    %808 = vmatpush2.msra.mxu0 0.0
    %809 = vmatprep.subr.mxu0 0.0
    %810 = vmatpush2.msra.mxu0 0.0
    %811 = vmatprep.subr.mxu0 0.0
    %812 = vmatpush2.msra.mxu0 0.0
    %813 = vmatprep.subr.mxu0 0.0
    %814 = vmatpush2.msra.mxu0 0.0
    %815 = vmatprep.mubr.f32.mxu0 0.0
    %v816 = vand.u32 %v664, 4294901760
    %817 = vmatmul.mubr.f32.gmra.mxu0 %v816
    %v818 = vpop.f32.mrf.mxu0
    %v819 = vadd.f32 %v743, %v818
    %v820 = vpop.f32.mrf.mxu0
    %821 = vdwg.mxu0
    %822 = vmatprep.subr.mxu0 0.0
    %823 = vmatpush1.msra.mxu0 0.0
    %824 = vmatprep.subr.mxu0 0.0
    %825 = vmatpush1.msra.mxu0 0.0
    %826 = vmatprep.subr.mxu0 0.0
    %827 = vmatpush1.msra.mxu0 0.0
    %828 = vmatprep.subr.mxu0 0.0
    %829 = vmatpush1.msra.mxu0 0.0
    %830 = vmatprep.subr.mxu0 0.0
    %831 = vmatpush1.msra.mxu0 0.0
    %832 = vmatprep.subr.mxu0 0.0
    %833 = vmatpush1.msra.mxu0 0.0
    %834 = vmatprep.subr.mxu0 0.0
    %835 = vmatpush1.msra.mxu0 0.0
    %836 = vmatprep.subr.mxu0 0.0
    %837 = vmatpush1.msra.mxu0 0.0
    %838 = vmatprep.subr.mxu0 0.0
    %839 = vmatpush1.msra.mxu0 0.0
    %840 = vmatprep.subr.mxu0 0.0
    %841 = vmatpush1.msra.mxu0 0.0
    %842 = vmatprep.subr.mxu0 0.0
    %843 = vmatpush1.msra.mxu0 0.0
    %844 = vmatprep.subr.mxu0 0.0
    %845 = vmatpush1.msra.mxu0 0.0
    %846 = vmatprep.subr.mxu0 0.0
    %847 = vmatpush1.msra.mxu0 0.0
    %848 = vmatprep.subr.mxu0 0.0
    %849 = vmatpush1.msra.mxu0 0.0
    %850 = vmatprep.subr.mxu0 0.0
    %851 = vmatpush1.msra.mxu0 0.0
    %852 = vmatprep.subr.mxu0 0.0
    %v853 = vand.u32 %v668, 4294901760
    %v854 = vsub.f32 %v668, %v853
    %855 = vmatpush1.msra.mxu0 %v854
    %856 = vmatprep.subr.mxu0 0.0
    %857 = vmatpush2.msra.mxu0 0.0
    %858 = vmatprep.subr.mxu0 0.0
    %859 = vmatpush2.msra.mxu0 0.0
    %860 = vmatprep.subr.mxu0 0.0
    %861 = vmatpush2.msra.mxu0 0.0
    %862 = vmatprep.subr.mxu0 0.0
    %863 = vmatpush2.msra.mxu0 0.0
    %864 = vmatprep.subr.mxu0 0.0
    %865 = vmatpush2.msra.mxu0 0.0
    %866 = vmatprep.subr.mxu0 0.0
    %867 = vmatpush2.msra.mxu0 0.0
    %868 = vmatprep.subr.mxu0 0.0
    %869 = vmatpush2.msra.mxu0 0.0
    %870 = vmatprep.subr.mxu0 0.0
    %871 = vmatpush2.msra.mxu0 0.0
    %872 = vmatprep.subr.mxu0 0.0
    %873 = vmatpush2.msra.mxu0 0.0
    %874 = vmatprep.subr.mxu0 0.0
    %875 = vmatpush2.msra.mxu0 0.0
    %876 = vmatprep.subr.mxu0 0.0
    %877 = vmatpush2.msra.mxu0 0.0
    %878 = vmatprep.subr.mxu0 0.0
    %879 = vmatpush2.msra.mxu0 0.0
    %880 = vmatprep.subr.mxu0 0.0
    %881 = vmatpush2.msra.mxu0 0.0
    %882 = vmatprep.subr.mxu0 0.0
    %883 = vmatpush2.msra.mxu0 0.0
    %884 = vmatprep.subr.mxu0 0.0
    %885 = vmatpush2.msra.mxu0 0.0
    %886 = vmatprep.subr.mxu0 0.0
    %887 = vmatpush2.msra.mxu0 0.0
    %888 = vmatprep.mubr.f32.mxu0 0.0
    %v889 = vand.u32 %v664, 4294901760
    %v890 = vsub.f32 %v664, %v889
    %891 = vmatmul.mubr.f32.gmra.mxu0 %v890
    %v892 = vpop.f32.mrf.mxu0
    %v893 = vadd.f32 %v819, %v892
    %v894 = vpop.f32.mrf.mxu0
    %895 = vdwg.mxu0
    %896 = vmatprep.subr.mxu0 0.0
    %897 = vmatpush1.msra.mxu0 0.0
    %898 = vmatprep.subr.mxu0 0.0
    %899 = vmatpush1.msra.mxu0 0.0
    %900 = vmatprep.subr.mxu0 0.0
    %901 = vmatpush1.msra.mxu0 0.0
    %902 = vmatprep.subr.mxu0 0.0
    %903 = vmatpush1.msra.mxu0 0.0
    %904 = vmatprep.subr.mxu0 0.0
    %905 = vmatpush1.msra.mxu0 0.0
    %906 = vmatprep.subr.mxu0 0.0
    %907 = vmatpush1.msra.mxu0 0.0
    %908 = vmatprep.subr.mxu0 0.0
    %909 = vmatpush1.msra.mxu0 0.0
    %910 = vmatprep.subr.mxu0 0.0
    %911 = vmatpush1.msra.mxu0 0.0
    %912 = vmatprep.subr.mxu0 0.0
    %913 = vmatpush1.msra.mxu0 0.0
    %914 = vmatprep.subr.mxu0 0.0
    %915 = vmatpush1.msra.mxu0 0.0
    %916 = vmatprep.subr.mxu0 0.0
    %917 = vmatpush1.msra.mxu0 0.0
    %918 = vmatprep.subr.mxu0 0.0
    %919 = vmatpush1.msra.mxu0 0.0
    %920 = vmatprep.subr.mxu0 0.0
    %921 = vmatpush1.msra.mxu0 0.0
    %922 = vmatprep.subr.mxu0 0.0
    %923 = vmatpush1.msra.mxu0 0.0
    %924 = vmatprep.subr.mxu0 0.0
    %925 = vmatpush1.msra.mxu0 0.0
    %926 = vmatprep.subr.mxu0 0.0
    %v927 = vand.u32 %v668, 4294901760
    %928 = vmatpush1.msra.mxu0 %v927
    %929 = vmatprep.subr.mxu0 0.0
    %930 = vmatpush2.msra.mxu0 0.0
    %931 = vmatprep.subr.mxu0 0.0
    %932 = vmatpush2.msra.mxu0 0.0
    %933 = vmatprep.subr.mxu0 0.0
    %934 = vmatpush2.msra.mxu0 0.0
    %935 = vmatprep.subr.mxu0 0.0
    %936 = vmatpush2.msra.mxu0 0.0
    %937 = vmatprep.subr.mxu0 0.0
    %938 = vmatpush2.msra.mxu0 0.0
    %939 = vmatprep.subr.mxu0 0.0
    %940 = vmatpush2.msra.mxu0 0.0
    %941 = vmatprep.subr.mxu0 0.0
    %942 = vmatpush2.msra.mxu0 0.0
    %943 = vmatprep.subr.mxu0 0.0
    %944 = vmatpush2.msra.mxu0 0.0
    %945 = vmatprep.subr.mxu0 0.0
    %946 = vmatpush2.msra.mxu0 0.0
    %947 = vmatprep.subr.mxu0 0.0
    %948 = vmatpush2.msra.mxu0 0.0
    %949 = vmatprep.subr.mxu0 0.0
    %950 = vmatpush2.msra.mxu0 0.0
    %951 = vmatprep.subr.mxu0 0.0
    %952 = vmatpush2.msra.mxu0 0.0
    %953 = vmatprep.subr.mxu0 0.0
    %954 = vmatpush2.msra.mxu0 0.0
    %955 = vmatprep.subr.mxu0 0.0
    %956 = vmatpush2.msra.mxu0 0.0
    %957 = vmatprep.subr.mxu0 0.0
    %958 = vmatpush2.msra.mxu0 0.0
    %959 = vmatprep.subr.mxu0 0.0
    %960 = vmatpush2.msra.mxu0 0.0
    %961 = vmatprep.mubr.f32.mxu0 0.0
    %v962 = vand.u32 %v664, 4294901760
    %v963 = vsub.f32 %v664, %v962
    %v964 = vand.u32 %v963, 4294901760
    %965 = vmatmul.mubr.f32.gmra.mxu0 %v964
    %v966 = vpop.f32.mrf.mxu0
    %v967 = vadd.f32 %v893, %v966
    %v968 = vpop.f32.mrf.mxu0
    %969 = vdwg.mxu0
    %970 = vmatprep.subr.mxu0 0.0
    %971 = vmatpush1.msra.mxu0 0.0
    %972 = vmatprep.subr.mxu0 0.0
    %973 = vmatpush1.msra.mxu0 0.0
    %974 = vmatprep.subr.mxu0 0.0
    %975 = vmatpush1.msra.mxu0 0.0
    %976 = vmatprep.subr.mxu0 0.0
    %977 = vmatpush1.msra.mxu0 0.0
    %978 = vmatprep.subr.mxu0 0.0
    %979 = vmatpush1.msra.mxu0 0.0
    %980 = vmatprep.subr.mxu0 0.0
    %981 = vmatpush1.msra.mxu0 0.0
    %982 = vmatprep.subr.mxu0 0.0
    %983 = vmatpush1.msra.mxu0 0.0
    %984 = vmatprep.subr.mxu0 0.0
    %985 = vmatpush1.msra.mxu0 0.0
    %986 = vmatprep.subr.mxu0 0.0
    %987 = vmatpush1.msra.mxu0 0.0
    %988 = vmatprep.subr.mxu0 0.0
    %989 = vmatpush1.msra.mxu0 0.0
    %990 = vmatprep.subr.mxu0 0.0
    %991 = vmatpush1.msra.mxu0 0.0
    %992 = vmatprep.subr.mxu0 0.0
    %993 = vmatpush1.msra.mxu0 0.0
    %994 = vmatprep.subr.mxu0 0.0
    %995 = vmatpush1.msra.mxu0 0.0
    %996 = vmatprep.subr.mxu0 0.0
    %997 = vmatpush1.msra.mxu0 0.0
    %998 = vmatprep.subr.mxu0 0.0
    %999 = vmatpush1.msra.mxu0 0.0
    %1000 = vmatprep.subr.mxu0 0.0
    %v1001 = vand.u32 %v668, 4294901760
    %v1002 = vsub.f32 %v668, %v1001
    %v1003 = vand.u32 %v1002, 4294901760
    %1004 = vmatpush1.msra.mxu0 %v1003
    %1005 = vmatprep.subr.mxu0 0.0
    %1006 = vmatpush2.msra.mxu0 0.0
    %1007 = vmatprep.subr.mxu0 0.0
    %1008 = vmatpush2.msra.mxu0 0.0
    %1009 = vmatprep.subr.mxu0 0.0
    %1010 = vmatpush2.msra.mxu0 0.0
    %1011 = vmatprep.subr.mxu0 0.0
    %1012 = vmatpush2.msra.mxu0 0.0
    %1013 = vmatprep.subr.mxu0 0.0
    %1014 = vmatpush2.msra.mxu0 0.0
    %1015 = vmatprep.subr.mxu0 0.0
    %1016 = vmatpush2.msra.mxu0 0.0
    %1017 = vmatprep.subr.mxu0 0.0
    %1018 = vmatpush2.msra.mxu0 0.0
    %1019 = vmatprep.subr.mxu0 0.0
    %1020 = vmatpush2.msra.mxu0 0.0
    %1021 = vmatprep.subr.mxu0 0.0
    %1022 = vmatpush2.msra.mxu0 0.0
    %1023 = vmatprep.subr.mxu0 0.0
    %1024 = vmatpush2.msra.mxu0 0.0
    %1025 = vmatprep.subr.mxu0 0.0
    %1026 = vmatpush2.msra.mxu0 0.0
    %1027 = vmatprep.subr.mxu0 0.0
    %1028 = vmatpush2.msra.mxu0 0.0
    %1029 = vmatprep.subr.mxu0 0.0
    %1030 = vmatpush2.msra.mxu0 0.0
    %1031 = vmatprep.subr.mxu0 0.0
    %1032 = vmatpush2.msra.mxu0 0.0
    %1033 = vmatprep.subr.mxu0 0.0
    %1034 = vmatpush2.msra.mxu0 0.0
    %1035 = vmatprep.subr.mxu0 0.0
    %1036 = vmatpush2.msra.mxu0 0.0
    %1037 = vmatprep.mubr.f32.mxu0 0.0
    %v1038 = vand.u32 %v664, 4294901760
    %1039 = vmatmul.mubr.f32.gmra.mxu0 %v1038
    %v1040 = vpop.f32.mrf.mxu0
    %v1041 = vadd.f32 %v967, %v1040
    %v1042 = vpop.f32.mrf.mxu0
    %1043 = vdwg.mxu0
    %1044 = vmatprep.subr.mxu0 0.0
    %1045 = vmatpush1.msra.mxu0 0.0
    %1046 = vmatprep.subr.mxu0 0.0
    %1047 = vmatpush1.msra.mxu0 0.0
    %1048 = vmatprep.subr.mxu0 0.0
    %1049 = vmatpush1.msra.mxu0 0.0
    %1050 = vmatprep.subr.mxu0 0.0
    %1051 = vmatpush1.msra.mxu0 0.0
    %1052 = vmatprep.subr.mxu0 0.0
    %1053 = vmatpush1.msra.mxu0 0.0
    %1054 = vmatprep.subr.mxu0 0.0
    %1055 = vmatpush1.msra.mxu0 0.0
    %1056 = vmatprep.subr.mxu0 0.0
    %1057 = vmatpush1.msra.mxu0 0.0
    %1058 = vmatprep.subr.mxu0 0.0
    %1059 = vmatpush1.msra.mxu0 0.0
    %1060 = vmatprep.subr.mxu0 0.0
    %1061 = vmatpush1.msra.mxu0 0.0
    %1062 = vmatprep.subr.mxu0 0.0
    %1063 = vmatpush1.msra.mxu0 0.0
    %1064 = vmatprep.subr.mxu0 0.0
    %1065 = vmatpush1.msra.mxu0 0.0
    %1066 = vmatprep.subr.mxu0 0.0
    %1067 = vmatpush1.msra.mxu0 0.0
    %1068 = vmatprep.subr.mxu0 0.0
    %1069 = vmatpush1.msra.mxu0 0.0
    %1070 = vmatprep.subr.mxu0 0.0
    %1071 = vmatpush1.msra.mxu0 0.0
    %1072 = vmatprep.subr.mxu0 0.0
    %1073 = vmatpush1.msra.mxu0 0.0
    %1074 = vmatprep.subr.mxu0 0.0
    %v1075 = vand.u32 %v668, 4294901760
    %1076 = vmatpush1.msra.mxu0 %v1075
    %1077 = vmatprep.subr.mxu0 0.0
    %1078 = vmatpush2.msra.mxu0 0.0
    %1079 = vmatprep.subr.mxu0 0.0
    %1080 = vmatpush2.msra.mxu0 0.0
    %1081 = vmatprep.subr.mxu0 0.0
    %1082 = vmatpush2.msra.mxu0 0.0
    %1083 = vmatprep.subr.mxu0 0.0
    %1084 = vmatpush2.msra.mxu0 0.0
    %1085 = vmatprep.subr.mxu0 0.0
    %1086 = vmatpush2.msra.mxu0 0.0
    %1087 = vmatprep.subr.mxu0 0.0
    %1088 = vmatpush2.msra.mxu0 0.0
    %1089 = vmatprep.subr.mxu0 0.0
    %1090 = vmatpush2.msra.mxu0 0.0
    %1091 = vmatprep.subr.mxu0 0.0
    %1092 = vmatpush2.msra.mxu0 0.0
    %1093 = vmatprep.subr.mxu0 0.0
    %1094 = vmatpush2.msra.mxu0 0.0
    %1095 = vmatprep.subr.mxu0 0.0
    %1096 = vmatpush2.msra.mxu0 0.0
    %1097 = vmatprep.subr.mxu0 0.0
    %1098 = vmatpush2.msra.mxu0 0.0
    %1099 = vmatprep.subr.mxu0 0.0
    %1100 = vmatpush2.msra.mxu0 0.0
    %1101 = vmatprep.subr.mxu0 0.0
    %1102 = vmatpush2.msra.mxu0 0.0
    %1103 = vmatprep.subr.mxu0 0.0
    %1104 = vmatpush2.msra.mxu0 0.0
    %1105 = vmatprep.subr.mxu0 0.0
    %1106 = vmatpush2.msra.mxu0 0.0
    %1107 = vmatprep.subr.mxu0 0.0
    %1108 = vmatpush2.msra.mxu0 0.0
    %1109 = vmatprep.mubr.f32.mxu0 0.0
    %v1110 = vand.u32 %v664, 4294901760
    %1111 = vmatmul.mubr.f32.gmra.mxu0 %v1110
    %v1112 = vpop.f32.mrf.mxu0
    %v1113 = vadd.f32 %v1041, %v1112
    %v1114 = vpop.f32.mrf.mxu0
    %1115 = vdwg.mxu0
    %v1116 = vxor.u32 %v1113, 2147483648
    %v1117 = vmul.f32 %v1116, 1.442695
    %v1118 = vpow.pop %v1117
    %v1119 = vadd.f32 %v1118, 1.0
    %v1120 = vrcp.pop %v1119
    %v1121 = vmul.f32 1.0, %v1120
    %v1122 = vlaneseq
    %v1123 = vshrl.u32 %v1122, 7
    %v1124 = vsub.s32 0, %v1123
    %v1125 = vrot.slane %v1121, %v1124
    %1127 = vbcast.lane.b32.xlu0 %v1125, 256
    %v1128 = vpop.permute.xlu0 %1127
    %s1130 = sor.u32 256, 8
    %1131 = vbcast.lane.b32.xlu0 %v1125, %s1130
    %v1132 = vpop.permute.xlu0 %1131
    %s1134 = sor.u32 256, 16
    %1135 = vbcast.lane.b32.xlu0 %v1125, %s1134
    %v1136 = vpop.permute.xlu0 %1135
    %s1138 = sor.u32 256, 24
    %1139 = vbcast.lane.b32.xlu0 %v1125, %s1138
    %v1140 = vpop.permute.xlu0 %1139
    %v1141 = vlaneseq
    %v1142 = vshrl.u32 %v1141, 7
    %v1143 = vsub.s32 1, %v1142
    %v1144 = vrot.slane %v1121, %v1143
    %1146 = vbcast.lane.b32.xlu0 %v1144, 256
    %v1147 = vpop.permute.xlu0 %1146
    %s1149 = sor.u32 256, 8
    %1150 = vbcast.lane.b32.xlu0 %v1144, %s1149
    %v1151 = vpop.permute.xlu0 %1150
    %s1153 = sor.u32 256, 16
    %1154 = vbcast.lane.b32.xlu0 %v1144, %s1153
    %v1155 = vpop.permute.xlu0 %1154
    %s1157 = sor.u32 256, 24
    %1158 = vbcast.lane.b32.xlu0 %v1144, %s1157
    %v1159 = vpop.permute.xlu0 %1158
    %v1160 = vmul.f32 %v35, %v1128
    %v1161 = vmul.f32 %v36, %v1128
    %v1162 = vmul.f32 %v37, %v1132
    %v1163 = vmul.f32 %v38, %v1132
    %v1164 = vmul.f32 %v39, %v1136
    %v1165 = vmul.f32 %v40, %v1136
    %v1166 = vmul.f32 %v41, %v1140
    %v1167 = vmul.f32 %v42, %v1140
    %v1168 = vmul.f32 %v43, %v1147
    %v1169 = vmul.f32 %v44, %v1147
    %v1170 = vmul.f32 %v45, %v1151
    %v1171 = vmul.f32 %v46, %v1151
    %v1172 = vmul.f32 %v47, %v1155
    %v1173 = vmul.f32 %v48, %v1155
    %v1174 = vmul.f32 %v49, %v1159
    %v1175 = vmul.f32 %v50, %v1159
    %1176 = vst [vmem:[#allocation5] sm:$0xff] %v1160
    %1177 = vst [vmem:[#allocation5 + $0x8] sm:$0xff] %v1161
    %1178 = vst [vmem:[#allocation5 + $0x10] sm:$0xff] %v1162
    %1179 = vst [vmem:[#allocation5 + $0x18] sm:$0xff] %v1163
    %1180 = vst [vmem:[#allocation5 + $0x20] sm:$0xff] %v1164
    %1181 = vst [vmem:[#allocation5 + $0x28] sm:$0xff] %v1165
    %1182 = vst [vmem:[#allocation5 + $0x30] sm:$0xff] %v1166
    %1183 = vst [vmem:[#allocation5 + $0x38] sm:$0xff] %v1167
    %1184 = vst [vmem:[#allocation5 + $0x40] sm:$0xff] %v1168
    %1185 = vst [vmem:[#allocation5 + $0x48] sm:$0xff] %v1169
    %1186 = vst [vmem:[#allocation5 + $0x50] sm:$0xff] %v1170
    %1187 = vst [vmem:[#allocation5 + $0x58] sm:$0xff] %v1171
    %1188 = vst [vmem:[#allocation5 + $0x60] sm:$0xff] %v1172
    %1189 = vst [vmem:[#allocation5 + $0x68] sm:$0xff] %v1173
    %1190 = vst [vmem:[#allocation5 + $0x70] sm:$0xff] %v1174
    %1191 = vst [vmem:[#allocation5 + $0x78] sm:$0xff] %v1175
    // Predicated region
    $region26: #{tpu_custom_call.1} parent=1 // pred_check
      _
    $region27: #{tpu_custom_call.1} parent=1 // pred_check_branch
      %1193 = sbr.rel (0) target = $region29
    $region28: #{tpu_custom_call.1} parent=1 // pred_region
      %s1195 = ssub.s32 2048, 2048
      %1196 = vsyncadd [#allocation4], %s1195
      %s1197 = sshll.u32 [#allocation5], 4
      %s1198 = int_to_ptr.vmem [resolvable:$true] %s1197
      %1203 = dma.vmem_to_hbm [thread:$0]  %s1198, 2048, %s5, [#allocation4], 256, 256, 16
    $region29: #{tpu_custom_call.1} parent=1 // pred_fallthru
      _
    // Predicated region
    $region30: #{tpu_custom_call.1} parent=1 // pred_check
      _
    $region31: #{tpu_custom_call.1} parent=1 // pred_check_branch
      %1205 = sbr.rel (0) target = $region33
    $region32: #{tpu_custom_call.1} parent=1 // pred_region
      %1206 = dma.done [#allocation4], 2048
    $region33: #{tpu_custom_call.1} parent=1 // pred_fallthru
      _
    %1207 = vsyncpa [#allocation3], 1
    %1208 = vsyncpa [#allocation4], 1

</llo_original>
